<compile_context>
chip_gen: v7x
topology: tpu7x:2x2x1
jax: 0.10.0
libtpu: 0.0.40
codegen_flags: <defaults>
</compile_context>

<pallas_src>
import functools

import jax
import jax.numpy as jnp
from jax.experimental import pallas as pl
from jax.experimental.pallas import tpu as pltpu


# ----------------------------------------------------------------------------
# Fused MLP kernel:  y = relu(relu(x @ W1 + b1) @ W2 + b2)
#   x: (TM, 128) f32   w1: (128, 64) bf16   b1: (1, 64) f32
#   w2: (64, D_out) bf16   b2: (1, D_out) f32   o: (TM, D_out) f32
# ----------------------------------------------------------------------------
def _att_fc_kernel(x_ref, w1_ref, b1_ref, w2_ref, b2_ref, o_ref):
    x = x_ref[...].astype(jnp.bfloat16)                      # bf16 MXU operand
    h = jnp.dot(x, w1_ref[...], preferred_element_type=jnp.float32)
    h = jnp.maximum(h + b1_ref[...], 0.0)                    # f32 epilogue, stays in vregs
    y = jnp.dot(h.astype(jnp.bfloat16), w2_ref[...],
                preferred_element_type=jnp.float32)
    o_ref[...] = jnp.maximum(y + b2_ref[...], 0.0)           # lane-dense f32 store


# ----------------------------------------------------------------------------
# Wrapper: one pallas_call, no grid for small batches, M-tiled grid otherwise.
# ----------------------------------------------------------------------------
def _att_fc(attention, w1, b1, w2, b2, *, block_m=256):
    B, D_in = attention.shape          # D_in = 128
    D_hid = w1.shape[1]                # 64
    D_out = w2.shape[1]                # feature_dim * num_classes (or feature_dim)

    # Keep the kernel's last (lane) dim a multiple of 128 so stores are
    # unmasked full-width vst; slice back below if we padded.
    D_out_pad = ((D_out + 127) // 128) * 128
    if D_out_pad != D_out:
        w2 = jnp.pad(w2, ((0, 0), (0, D_out_pad - D_out)))
        b2 = jnp.pad(b2, ((0, 0), (0, D_out_pad - D_out)))

    cost = pl.CostEstimate(
        flops=2 * B * (D_in * D_hid + D_hid * D_out_pad),
        transcendentals=0,
        bytes_accessed=(attention.size * attention.dtype.itemsize
                        + w1.size * w1.dtype.itemsize
                        + b1.size * b1.dtype.itemsize
                        + w2.size * w2.dtype.itemsize
                        + b2.size * b2.dtype.itemsize
                        + B * D_out_pad * 4))

    if B <= block_m:
        # Common (small-batch) case: single block, no grid, no double-buffering.
        y = pl.pallas_call(
            _att_fc_kernel,
            out_shape=jax.ShapeDtypeStruct((B, D_out_pad), jnp.float32),
            cost_estimate=cost,
        )(attention, w1, b1, w2, b2)
    else:
        # Large batch: tile the M axis; "parallel" shards across v7x's 2 TCs
        # and keeps the live VMEM set bounded on v5e/v6e/v7x.
        tm = block_m
        y = pl.pallas_call(
            _att_fc_kernel,
            out_shape=jax.ShapeDtypeStruct((B, D_out_pad), jnp.float32),
            grid=(pl.cdiv(B, tm),),
            in_specs=[
                pl.BlockSpec((tm, D_in), lambda i: (i, 0)),
                pl.BlockSpec((D_in, D_hid), lambda i: (0, 0)),
                pl.BlockSpec((1, D_hid), lambda i: (0, 0)),
                pl.BlockSpec((D_hid, D_out_pad), lambda i: (0, 0)),
                pl.BlockSpec((1, D_out_pad), lambda i: (0, 0)),
            ],
            out_specs=pl.BlockSpec((tm, D_out_pad), lambda i: (i, 0)),
            compiler_params=pltpu.CompilerParams(
                dimension_semantics=("parallel",)),
            cost_estimate=cost,
        )(attention, w1, b1, w2, b2)

    if D_out_pad != D_out:
        y = y[:, :D_out]
    return y


# ----------------------------------------------------------------------------
# Module wrapper (matches AttentionalWeights.forward semantics)
# ----------------------------------------------------------------------------
def attentional_weights_forward(params, attention, *, feature_dim, num_classes,
                                attention_type):
    """attention: (B, 128) -> (B, feature_dim, num_classes) or (B, feature_dim, 1)."""
    if attention_type is None:
        return None
    y = _att_fc(attention, params['w1'], params['b1'], params['w2'], params['b2'])
    if attention_type == 'single_head':
        return y.reshape(-1, feature_dim, 1)
    return y.reshape(-1, feature_dim, num_classes)


# ----------------------------------------------------------------------------
# Parameters: weights pre-transposed (in, out) and stored in bf16; biases f32.
# ----------------------------------------------------------------------------
def init_params(key, feature_dim, num_classes, attention_type):
    if attention_type == 'multi_head':
        out_dim = feature_dim * num_classes
    elif attention_type == 'single_head':
        out_dim = feature_dim
    else:
        return {}
    k1, k2, k3, k4 = jax.random.split(key, 4)
    return {
        'w1': (jax.random.normal(k1, (128, 64), jnp.float32)
               / jnp.sqrt(128.0)).astype(jnp.bfloat16),
        'b1': jax.random.normal(k2, (1, 64), jnp.float32) * 0.01,
        'w2': (jax.random.normal(k3, (64, out_dim), jnp.float32)
               / jnp.sqrt(64.0)).astype(jnp.bfloat16),
        'b2': jax.random.normal(k4, (1, out_dim), jnp.float32) * 0.01,
    }


# ----------------------------------------------------------------------------
# Pure-JAX reference (f32 math on the bf16-valued weights)
# ----------------------------------------------------------------------------
def _reference(params, attention, *, feature_dim, num_classes, attention_type):
    w1 = params['w1'].astype(jnp.float32)
    w2 = params['w2'].astype(jnp.float32)
    h = jnp.maximum(attention @ w1 + params['b1'], 0.0)
    y = jnp.maximum(h @ w2 + params['b2'], 0.0)
    if attention_type == 'single_head':
        return y.reshape(-1, feature_dim, 1)
    return y.reshape(-1, feature_dim, num_classes)


if __name__ == "__main__":
    feature_dim = 128
    num_classes = 16

    key = jax.random.PRNGKey(0)
    k_mh, k_sh, k_x, k_xl = jax.random.split(key, 4)

    # bf16 operands vs. f32 reference -> loosened tolerance.
    TOL = dict(atol=5e-2, rtol=5e-2)

    # --- multi_head, small batch (no-grid path) ---
    B = 2
    attention = jax.random.normal(k_x, (B, 128), jnp.float32)
    params_mh = init_params(k_mh, feature_dim, num_classes, 'multi_head')
    fwd_mh = jax.jit(functools.partial(
        attentional_weights_forward, feature_dim=feature_dim,
        num_classes=num_classes, attention_type='multi_head'))
    out_mh = fwd_mh(params_mh, attention)
    jax.block_until_ready(out_mh)
    ref_mh = _reference(params_mh, attention, feature_dim=feature_dim,
                        num_classes=num_classes, attention_type='multi_head')
    assert out_mh.shape == (B, feature_dim, num_classes)
    assert jnp.all(jnp.isfinite(out_mh))
    assert jnp.allclose(out_mh, ref_mh, **TOL)

    # --- single_head, small batch ---
    params_sh = init_params(k_sh, feature_dim, num_classes, 'single_head')
    fwd_sh = jax.jit(functools.partial(
        attentional_weights_forward, feature_dim=feature_dim,
        num_classes=num_classes, attention_type='single_head'))
    out_sh = fwd_sh(params_sh, attention)
    jax.block_until_ready(out_sh)
    ref_sh = _reference(params_sh, attention, feature_dim=feature_dim,
                        num_classes=num_classes, attention_type='single_head')
    assert out_sh.shape == (B, feature_dim, 1)
    assert jnp.all(jnp.isfinite(out_sh))
    assert jnp.allclose(out_sh, ref_sh, **TOL)

    # --- multi_head, larger batch (exercises the M-tiled "parallel" path) ---
    BL = 512
    attention_l = jax.random.normal(k_xl, (BL, 128), jnp.float32)
    out_l = fwd_mh(params_mh, attention_l)
    jax.block_until_ready(out_l)
    ref_l = _reference(params_mh, attention_l, feature_dim=feature_dim,
                       num_classes=num_classes, attention_type='multi_head')
    assert out_l.shape == (BL, feature_dim, num_classes)
    assert jnp.all(jnp.isfinite(out_l))
    assert jnp.allclose(out_l, ref_l, **TOL)

    # --- attention_type is None returns None (module semantics) ---
    assert attentional_weights_forward({}, attention, feature_dim=feature_dim,
                                       num_classes=num_classes,
                                       attention_type=None) is None

    print("KERNEL_OK")
</pallas_src>

<mosaic_0001>
module attributes {stable_mosaic.version = 11 : i64} {
  func.func @_att_fc_kernel(%arg0: memref<2x128xf32, #tpu.memory_space<vmem>>, %arg1: memref<128x64xbf16, #tpu.memory_space<vmem>>, %arg2: memref<1x64xf32, #tpu.memory_space<vmem>>, %arg3: memref<64x2048xbf16, #tpu.memory_space<vmem>>, %arg4: memref<1x2048xf32, #tpu.memory_space<vmem>>, %arg5: memref<2x2048xf32, #tpu.memory_space<vmem>>) attributes {dimension_semantics = [], scalar_prefetch = 0 : i64, scratch_operands = 0 : i64, tpu.core_type = #tpu.core_type<tc>} {
    %c0 = arith.constant 0 : index
    %c0_0 = arith.constant 0 : index
    %0 = vector.load %arg0[%c0, %c0_0] : memref<2x128xf32, #tpu.memory_space<vmem>>, vector<2x128xf32>
    %1 = arith.truncf %0 : vector<2x128xf32> to vector<2x128xbf16>
    %c0_1 = arith.constant 0 : index
    %c0_2 = arith.constant 0 : index
    %2 = vector.load %arg1[%c0_1, %c0_2] : memref<128x64xbf16, #tpu.memory_space<vmem>>, vector<128x64xbf16>
    %cst = arith.constant dense<0.000000e+00> : vector<2x64xf32>
    %3 = tpu.matmul %1, %2, %cst {dimension_numbers = #tpu.dot_dimension_numbers<[1], [0], [0], [1], [0, 0, 1, 1], [], []>} : vector<2x128xbf16>, vector<128x64xbf16>, vector<2x64xf32> -> vector<2x64xf32>
    %c0_3 = arith.constant 0 : index
    %c0_4 = arith.constant 0 : index
    %4 = vector.load %arg2[%c0_3, %c0_4] : memref<1x64xf32, #tpu.memory_space<vmem>>, vector<1x64xf32>
    %5 = vector.broadcast %4 : vector<1x64xf32> to vector<2x64xf32>
    %6 = arith.addf %3, %5 : vector<2x64xf32>
    %cst_5 = arith.constant 0.000000e+00 : f32
    %7 = vector.broadcast %cst_5 : f32 to vector<2x64xf32>
    %8 = arith.maximumf %6, %7 : vector<2x64xf32>
    %9 = arith.truncf %8 : vector<2x64xf32> to vector<2x64xbf16>
    %c0_6 = arith.constant 0 : index
    %c0_7 = arith.constant 0 : index
    %10 = vector.load %arg3[%c0_6, %c0_7] : memref<64x2048xbf16, #tpu.memory_space<vmem>>, vector<64x2048xbf16>
    %cst_8 = arith.constant dense<0.000000e+00> : vector<2x2048xf32>
    %11 = tpu.matmul %9, %10, %cst_8 {dimension_numbers = #tpu.dot_dimension_numbers<[1], [0], [0], [1], [0, 0, 1, 1], [], []>} : vector<2x64xbf16>, vector<64x2048xbf16>, vector<2x2048xf32> -> vector<2x2048xf32>
    %c0_9 = arith.constant 0 : index
    %c0_10 = arith.constant 0 : index
    %12 = vector.load %arg4[%c0_9, %c0_10] : memref<1x2048xf32, #tpu.memory_space<vmem>>, vector<1x2048xf32>
    %13 = vector.broadcast %12 : vector<1x2048xf32> to vector<2x2048xf32>
    %14 = arith.addf %11, %13 : vector<2x2048xf32>
    %cst_11 = arith.constant 0.000000e+00 : f32
    %15 = vector.broadcast %cst_11 : f32 to vector<2x2048xf32>
    %16 = arith.maximumf %14, %15 : vector<2x2048xf32>
    %c0_12 = arith.constant 0 : index
    %c0_13 = arith.constant 0 : index
    %17 = vector.load %arg5[%c0_12, %c0_13] : memref<2x2048xf32, #tpu.memory_space<vmem>>, vector<2x2048xf32>
    tpu.vector_store %arg5[%c0_12, %c0_13], %16 {strides = array<i32>} : memref<2x2048xf32, #tpu.memory_space<vmem>>, vector<2x2048xf32>,
    return
  }
}

</mosaic_0001>

<llo_original>
// kernel: attentional_weights_forward.1
$region0: #{attentional_weights_forward.1}
  #allocation0 [shape = 'u32[]', space=smem, size = 0x4, offset = 0x4, fixed_abs, tag = 'smem constant byte address 0x4 - core index']
  #allocation1 [shape = 'u32[144,128]{1,0:T(1,128)}', space=vmem, size = 0x12000, scoped, tag = 'internal scratch']
  %s0 = inlined_call_operand.vmem [shape: f32[2,128], index: 0, kind: input, shape index: {}]
  %s1 = inlined_call_operand.vmem [shape: bf16[128,64], index: 1, kind: input, shape index: {}]
  %s2 = inlined_call_operand.vmem [shape: f32[1,64], index: 2, kind: input, shape index: {}]
  %s3 = inlined_call_operand.hbm [shape: bf16[64,2048], index: 3, kind: input, shape index: {}]
  %s4 = inlined_call_operand.vmem [shape: f32[1,2048], index: 4, kind: input, shape index: {}]
  %s5 = inlined_call_operand.vmem [shape: f32[2,2048], index: 5, kind: output, shape index: {}]
  %s6 = sld [smem:[#allocation0]]
  $region34: #{attentional_weights_forward.1} parent=0
    _
  %s8 = ssub.s32 1, %s6
  %s9 = scalar_select 0, %s8, %s6
  $region1: #{attentional_weights_forward.1} parent=0
    #allocation2 [shape = 'u8[262144]{0}', space=vmem, size = 0x40000, scoped, tag = 'input window, operand 3, single buffered']
    #allocation3 [shape = 's32[1]{0}', space=sflag, size = 0x4, scoped, tag = 'scoped memory for attentional_weights_forward.1']
    %10 = vsyncpa [#allocation3], 0
    // Predicated region
    $region2: #{attentional_weights_forward.1} parent=1 // pred_check
      _
    $region3: #{attentional_weights_forward.1} parent=1 // pred_check_branch
      %12 = sbr.rel (0) target = $region5
    $region4: #{attentional_weights_forward.1} parent=1 // pred_region
      _
    $region5: #{attentional_weights_forward.1} parent=1 // pred_fallthru
      _
    // Predicated region
    $region6: #{attentional_weights_forward.1} parent=1 // pred_check
      _
    $region7: #{attentional_weights_forward.1} parent=1 // pred_check_branch
      %14 = sbr.rel (0) target = $region9
    $region8: #{attentional_weights_forward.1} parent=1 // pred_region
      _
    $region9: #{attentional_weights_forward.1} parent=1 // pred_fallthru
      _
    // Predicated region
    $region10: #{attentional_weights_forward.1} parent=1 // pred_check
      _
    $region11: #{attentional_weights_forward.1} parent=1 // pred_check_branch
      %16 = sbr.rel (0) target = $region13
    $region12: #{attentional_weights_forward.1} parent=1 // pred_region
      _
    $region13: #{attentional_weights_forward.1} parent=1 // pred_fallthru
      _
    // Predicated region
    $region14: #{attentional_weights_forward.1} parent=1 // pred_check
      _
    $region15: #{attentional_weights_forward.1} parent=1 // pred_check_branch
      %18 = sbr.rel (0) target = $region17
    $region16: #{attentional_weights_forward.1} parent=1 // pred_region
      %s20 = ssub.s32 8192, 8192
      %21 = vsyncadd [#allocation3], %s20
      %s22 = sshll.u32 [#allocation2], 4
      %s23 = int_to_ptr.vmem [resolvable:$true] %s22
      %28 = dma.hbm_to_vmem [thread:$0]  %s3, 8192, %s23, [#allocation3], 1024, 1024, 64
    $region17: #{attentional_weights_forward.1} parent=1 // pred_fallthru
      _
    // Predicated region
    $region18: #{attentional_weights_forward.1} parent=1 // pred_check
      _
    $region19: #{attentional_weights_forward.1} parent=1 // pred_check_branch
      %30 = sbr.rel (0) target = $region21
    $region20: #{attentional_weights_forward.1} parent=1 // pred_region
      _
    $region21: #{attentional_weights_forward.1} parent=1 // pred_fallthru
      _
    // Predicated region
    $region22: #{attentional_weights_forward.1} parent=1 // pred_check
      _
    $region23: #{attentional_weights_forward.1} parent=1 // pred_check_branch
      %32 = sbr.rel (0) target = $region25
    $region24: #{attentional_weights_forward.1} parent=1 // pred_region
      %33 = dma.done [#allocation3], 8192
    $region25: #{attentional_weights_forward.1} parent=1 // pred_fallthru
      _
    %v35 = vld [vmem:[%s0] sm:$0x3]
    %v36 = vpack.c.bf16 %v35, %v35
    %v37 = vld [vmem:[%s1] sm:$0xf]
    %v38 = vld [vmem:[%s1 + $0x4] sm:$0xf]
    %v39 = vld [vmem:[%s1 + $0x8] sm:$0xf]
    %v40 = vld [vmem:[%s1 + $0xc] sm:$0xf]
    %v41 = vld [vmem:[%s1 + $0x10] sm:$0xf]
    %v42 = vld [vmem:[%s1 + $0x14] sm:$0xf]
    %v43 = vld [vmem:[%s1 + $0x18] sm:$0xf]
    %v44 = vld [vmem:[%s1 + $0x1c] sm:$0xf]
    %v45 = vld [vmem:[%s1 + $0x20] sm:$0xf]
    %v46 = vld [vmem:[%s1 + $0x24] sm:$0xf]
    %v47 = vld [vmem:[%s1 + $0x28] sm:$0xf]
    %v48 = vld [vmem:[%s1 + $0x2c] sm:$0xf]
    %v49 = vld [vmem:[%s1 + $0x30] sm:$0xf]
    %v50 = vld [vmem:[%s1 + $0x34] sm:$0xf]
    %v51 = vld [vmem:[%s1 + $0x38] sm:$0xf]
    %v52 = vld [vmem:[%s1 + $0x3c] sm:$0xf]
    %v53 = vld [vmem:[%s2] sm:$0x1]
    %v55 = vlaneseq
    %v56 = vshrl.u32 %v55, 7
    %v57 = vsub.s32 0, %v56
    %v58 = vrot.slane %v53, %v57
    %v76 = vunpack.c.l.b16 %v37
    %v77 = vunpack.c.l.b16 %v38
    %v78 = vunpack.c.l.b16 %v39
    %v79 = vunpack.c.l.b16 %v40
    %v80 = vunpack.c.l.b16 %v41
    %v81 = vunpack.c.l.b16 %v42
    %v82 = vunpack.c.l.b16 %v43
    %v83 = vunpack.c.l.b16 %v44
    %v84 = vunpack.c.l.b16 %v45
    %v85 = vunpack.c.l.b16 %v46
    %v86 = vunpack.c.l.b16 %v47
    %v87 = vunpack.c.l.b16 %v48
    %v88 = vunpack.c.l.b16 %v49
    %v89 = vunpack.c.l.b16 %v50
    %v90 = vunpack.c.l.b16 %v51
    %v91 = vunpack.c.l.b16 %v52
    %v92 = vpack.c.b16 %v77, %v76
    %v93 = vpack.c.b16 %v79, %v78
    %v94 = vpack.c.b16 %v81, %v80
    %v95 = vpack.c.b16 %v83, %v82
    %v96 = vpack.c.b16 %v85, %v84
    %v97 = vpack.c.b16 %v87, %v86
    %v98 = vpack.c.b16 %v89, %v88
    %v99 = vpack.c.b16 %v91, %v90
    %108 = vmatprep.subr.bf16.mxu0 0
    %109 = vmatpush1.bf16.msra.mxu0 %v92
    %110 = vmatprep.subr.bf16.mxu0 0
    %111 = vmatpush1.bf16.msra.mxu0 %v93
    %112 = vmatprep.subr.bf16.mxu0 0
    %113 = vmatpush1.bf16.msra.mxu0 %v94
    %114 = vmatprep.subr.bf16.mxu0 0
    %115 = vmatpush1.bf16.msra.mxu0 %v95
    %116 = vmatprep.subr.bf16.mxu0 0
    %117 = vmatpush1.bf16.msra.mxu0 %v96
    %118 = vmatprep.subr.bf16.mxu0 0
    %119 = vmatpush1.bf16.msra.mxu0 %v97
    %120 = vmatprep.subr.bf16.mxu0 0
    %121 = vmatpush1.bf16.msra.mxu0 %v98
    %122 = vmatprep.subr.bf16.mxu0 0
    %123 = vmatpush1.bf16.msra.mxu0 %v99
    %124 = vmatprep.subr.bf16.mxu0 0
    %125 = vmatpush1.bf16.msra.mxu0 0
    %126 = vmatprep.subr.bf16.mxu0 0
    %127 = vmatpush1.bf16.msra.mxu0 0
    %128 = vmatprep.subr.bf16.mxu0 0
    %129 = vmatpush1.bf16.msra.mxu0 0
    %130 = vmatprep.subr.bf16.mxu0 0
    %131 = vmatpush1.bf16.msra.mxu0 0
    %132 = vmatprep.subr.bf16.mxu0 0
    %133 = vmatpush1.bf16.msra.mxu0 0
    %134 = vmatprep.subr.bf16.mxu0 0
    %135 = vmatpush1.bf16.msra.mxu0 0
    %136 = vmatprep.subr.bf16.mxu0 0
    %137 = vmatpush1.bf16.msra.mxu0 0
    %138 = vmatprep.subr.bf16.mxu0 0
    %139 = vmatpush1.bf16.msra.mxu0 0
    %140 = vmatprep.mubr.bf16.mxu0 0
    %141 = vmatmul.mubr.bf16.gmra.mrb[0].mxu0 %v36
    %v142 = vpop.f32.mrb[0].mxu0
    %v143 = vadd.f32 %v58, %v142
    %v144 = vpop.f32.mrb[0].mxu0
    %v145 = vpop.f32.mrb[0].mxu0
    %v146 = vpop.f32.mrb[0].mxu0
    %147 = vdwg.mxu0
    %v148 = vmax.f32 %v143, 0.0
    %v149 = vpack.c.bf16 %v148, %v148
    %v150 = vld [vmem:[#allocation2] sm:$0xff]
    %v151 = vld [vmem:[#allocation2 + $0x8] sm:$0xff]
    %v152 = vld [vmem:[#allocation2 + $0x10] sm:$0xff]
    %v153 = vld [vmem:[#allocation2 + $0x18] sm:$0xff]
    %v154 = vld [vmem:[#allocation2 + $0x20] sm:$0xff]
    %v155 = vld [vmem:[#allocation2 + $0x28] sm:$0xff]
    %v156 = vld [vmem:[#allocation2 + $0x30] sm:$0xff]
    %v157 = vld [vmem:[#allocation2 + $0x38] sm:$0xff]
    %v158 = vld [vmem:[#allocation2 + $0x40] sm:$0xff]
    %v159 = vld [vmem:[#allocation2 + $0x48] sm:$0xff]
    %v160 = vld [vmem:[#allocation2 + $0x50] sm:$0xff]
    %v161 = vld [vmem:[#allocation2 + $0x58] sm:$0xff]
    %v162 = vld [vmem:[#allocation2 + $0x60] sm:$0xff]
    %v163 = vld [vmem:[#allocation2 + $0x68] sm:$0xff]
    %v164 = vld [vmem:[#allocation2 + $0x70] sm:$0xff]
    %v165 = vld [vmem:[#allocation2 + $0x78] sm:$0xff]
    %v166 = vld [vmem:[#allocation2 + $0x80] sm:$0xff]
    %v167 = vld [vmem:[#allocation2 + $0x88] sm:$0xff]
    %v168 = vld [vmem:[#allocation2 + $0x90] sm:$0xff]
    %v169 = vld [vmem:[#allocation2 + $0x98] sm:$0xff]
    %v170 = vld [vmem:[#allocation2 + $0xa0] sm:$0xff]
    %v171 = vld [vmem:[#allocation2 + $0xa8] sm:$0xff]
    %v172 = vld [vmem:[#allocation2 + $0xb0] sm:$0xff]
    %v173 = vld [vmem:[#allocation2 + $0xb8] sm:$0xff]
    %v174 = vld [vmem:[#allocation2 + $0xc0] sm:$0xff]
    %v175 = vld [vmem:[#allocation2 + $0xc8] sm:$0xff]
    %v176 = vld [vmem:[#allocation2 + $0xd0] sm:$0xff]
    %v177 = vld [vmem:[#allocation2 + $0xd8] sm:$0xff]
    %v178 = vld [vmem:[#allocation2 + $0xe0] sm:$0xff]
    %v179 = vld [vmem:[#allocation2 + $0xe8] sm:$0xff]
    %v180 = vld [vmem:[#allocation2 + $0xf0] sm:$0xff]
    %v181 = vld [vmem:[#allocation2 + $0xf8] sm:$0xff]
    %v182 = vld [vmem:[#allocation2 + $0x100] sm:$0xff]
    %v183 = vld [vmem:[#allocation2 + $0x108] sm:$0xff]
    %v184 = vld [vmem:[#allocation2 + $0x110] sm:$0xff]
    %v185 = vld [vmem:[#allocation2 + $0x118] sm:$0xff]
    %v186 = vld [vmem:[#allocation2 + $0x120] sm:$0xff]
    %v187 = vld [vmem:[#allocation2 + $0x128] sm:$0xff]
    %v188 = vld [vmem:[#allocation2 + $0x130] sm:$0xff]
    %v189 = vld [vmem:[#allocation2 + $0x138] sm:$0xff]
    %v190 = vld [vmem:[#allocation2 + $0x140] sm:$0xff]
    %v191 = vld [vmem:[#allocation2 + $0x148] sm:$0xff]
    %v192 = vld [vmem:[#allocation2 + $0x150] sm:$0xff]
    %v193 = vld [vmem:[#allocation2 + $0x158] sm:$0xff]
    %v194 = vld [vmem:[#allocation2 + $0x160] sm:$0xff]
    %v195 = vld [vmem:[#allocation2 + $0x168] sm:$0xff]
    %v196 = vld [vmem:[#allocation2 + $0x170] sm:$0xff]
    %v197 = vld [vmem:[#allocation2 + $0x178] sm:$0xff]
    %v198 = vld [vmem:[#allocation2 + $0x180] sm:$0xff]
    %v199 = vld [vmem:[#allocation2 + $0x188] sm:$0xff]
    %v200 = vld [vmem:[#allocation2 + $0x190] sm:$0xff]
    %v201 = vld [vmem:[#allocation2 + $0x198] sm:$0xff]
    %v202 = vld [vmem:[#allocation2 + $0x1a0] sm:$0xff]
    %v203 = vld [vmem:[#allocation2 + $0x1a8] sm:$0xff]
    %v204 = vld [vmem:[#allocation2 + $0x1b0] sm:$0xff]
    %v205 = vld [vmem:[#allocation2 + $0x1b8] sm:$0xff]
    %v206 = vld [vmem:[#allocation2 + $0x1c0] sm:$0xff]
    %v207 = vld [vmem:[#allocation2 + $0x1c8] sm:$0xff]
    %v208 = vld [vmem:[#allocation2 + $0x1d0] sm:$0xff]
    %v209 = vld [vmem:[#allocation2 + $0x1d8] sm:$0xff]
    %v210 = vld [vmem:[#allocation2 + $0x1e0] sm:$0xff]
    %v211 = vld [vmem:[#allocation2 + $0x1e8] sm:$0xff]
    %v212 = vld [vmem:[#allocation2 + $0x1f0] sm:$0xff]
    %v213 = vld [vmem:[#allocation2 + $0x1f8] sm:$0xff]
    %v214 = vld [vmem:[%s4] sm:$0xff]
    %v215 = vld [vmem:[%s4 + $0x8] sm:$0xff]
    %v218 = vlaneseq
    %v219 = vshrl.u32 %v218, 7
    %v220 = vsub.s32 0, %v219
    %v221 = vrot.slane %v214, %v220
    %v222 = vlaneseq
    %v223 = vshrl.u32 %v222, 7
    %v224 = vsub.s32 1, %v223
    %v225 = vrot.slane %v214, %v224
    %v226 = vlaneseq
    %v227 = vshrl.u32 %v226, 7
    %v228 = vsub.s32 2, %v227
    %v229 = vrot.slane %v214, %v228
    %v230 = vlaneseq
    %v231 = vshrl.u32 %v230, 7
    %v232 = vsub.s32 3, %v231
    %v233 = vrot.slane %v214, %v232
    %v234 = vlaneseq
    %v235 = vshrl.u32 %v234, 7
    %v236 = vsub.s32 4, %v235
    %v237 = vrot.slane %v214, %v236
    %v238 = vlaneseq
    %v239 = vshrl.u32 %v238, 7
    %v240 = vsub.s32 5, %v239
    %v241 = vrot.slane %v214, %v240
    %v242 = vlaneseq
    %v243 = vshrl.u32 %v242, 7
    %v244 = vsub.s32 6, %v243
    %v245 = vrot.slane %v214, %v244
    %v246 = vlaneseq
    %v247 = vshrl.u32 %v246, 7
    %v248 = vsub.s32 7, %v247
    %v249 = vrot.slane %v214, %v248
    %v250 = vlaneseq
    %v251 = vshrl.u32 %v250, 7
    %v252 = vsub.s32 0, %v251
    %v253 = vrot.slane %v215, %v252
    %v254 = vlaneseq
    %v255 = vshrl.u32 %v254, 7
    %v256 = vsub.s32 1, %v255
    %v257 = vrot.slane %v215, %v256
    %v258 = vlaneseq
    %v259 = vshrl.u32 %v258, 7
    %v260 = vsub.s32 2, %v259
    %v261 = vrot.slane %v215, %v260
    %v262 = vlaneseq
    %v263 = vshrl.u32 %v262, 7
    %v264 = vsub.s32 3, %v263
    %v265 = vrot.slane %v215, %v264
    %v266 = vlaneseq
    %v267 = vshrl.u32 %v266, 7
    %v268 = vsub.s32 4, %v267
    %v269 = vrot.slane %v215, %v268
    %v270 = vlaneseq
    %v271 = vshrl.u32 %v270, 7
    %v272 = vsub.s32 5, %v271
    %v273 = vrot.slane %v215, %v272
    %v274 = vlaneseq
    %v275 = vshrl.u32 %v274, 7
    %v276 = vsub.s32 6, %v275
    %v277 = vrot.slane %v215, %v276
    %v278 = vlaneseq
    %v279 = vshrl.u32 %v278, 7
    %v280 = vsub.s32 7, %v279
    %v281 = vrot.slane %v215, %v280
    %v362 = vunpack.c.l.b16 %v150
    %v363 = vunpack.c.h.b16 %v150
    %v364 = vunpack.c.l.b16 %v151
    %v365 = vunpack.c.h.b16 %v151
    %v366 = vunpack.c.l.b16 %v152
    %v367 = vunpack.c.h.b16 %v152
    %v368 = vunpack.c.l.b16 %v153
    %v369 = vunpack.c.h.b16 %v153
    %v370 = vunpack.c.l.b16 %v154
    %v371 = vunpack.c.h.b16 %v154
    %v372 = vunpack.c.l.b16 %v155
    %v373 = vunpack.c.h.b16 %v155
    %v374 = vunpack.c.l.b16 %v156
    %v375 = vunpack.c.h.b16 %v156
    %v376 = vunpack.c.l.b16 %v157
    %v377 = vunpack.c.h.b16 %v157
    %v378 = vunpack.c.l.b16 %v158
    %v379 = vunpack.c.h.b16 %v158
    %v380 = vunpack.c.l.b16 %v159
    %v381 = vunpack.c.h.b16 %v159
    %v382 = vunpack.c.l.b16 %v160
    %v383 = vunpack.c.h.b16 %v160
    %v384 = vunpack.c.l.b16 %v161
    %v385 = vunpack.c.h.b16 %v161
    %v386 = vunpack.c.l.b16 %v162
    %v387 = vunpack.c.h.b16 %v162
    %v388 = vunpack.c.l.b16 %v163
    %v389 = vunpack.c.h.b16 %v163
    %v390 = vunpack.c.l.b16 %v164
    %v391 = vunpack.c.h.b16 %v164
    %v392 = vunpack.c.l.b16 %v165
    %v393 = vunpack.c.h.b16 %v165
    %v394 = vunpack.c.l.b16 %v166
    %v395 = vunpack.c.h.b16 %v166
    %v396 = vunpack.c.l.b16 %v167
    %v397 = vunpack.c.h.b16 %v167
    %v398 = vunpack.c.l.b16 %v168
    %v399 = vunpack.c.h.b16 %v168
    %v400 = vunpack.c.l.b16 %v169
    %v401 = vunpack.c.h.b16 %v169
    %v402 = vunpack.c.l.b16 %v170
    %v403 = vunpack.c.h.b16 %v170
    %v404 = vunpack.c.l.b16 %v171
    %v405 = vunpack.c.h.b16 %v171
    %v406 = vunpack.c.l.b16 %v172
    %v407 = vunpack.c.h.b16 %v172
    %v408 = vunpack.c.l.b16 %v173
    %v409 = vunpack.c.h.b16 %v173
    %v410 = vunpack.c.l.b16 %v174
    %v411 = vunpack.c.h.b16 %v174
    %v412 = vunpack.c.l.b16 %v175
    %v413 = vunpack.c.h.b16 %v175
    %v414 = vunpack.c.l.b16 %v176
    %v415 = vunpack.c.h.b16 %v176
    %v416 = vunpack.c.l.b16 %v177
    %v417 = vunpack.c.h.b16 %v177
    %v418 = vunpack.c.l.b16 %v178
    %v419 = vunpack.c.h.b16 %v178
    %v420 = vunpack.c.l.b16 %v179
    %v421 = vunpack.c.h.b16 %v179
    %v422 = vunpack.c.l.b16 %v180
    %v423 = vunpack.c.h.b16 %v180
    %v424 = vunpack.c.l.b16 %v181
    %v425 = vunpack.c.h.b16 %v181
    %v426 = vunpack.c.l.b16 %v182
    %v427 = vunpack.c.h.b16 %v182
    %v428 = vunpack.c.l.b16 %v183
    %v429 = vunpack.c.h.b16 %v183
    %v430 = vunpack.c.l.b16 %v184
    %v431 = vunpack.c.h.b16 %v184
    %v432 = vunpack.c.l.b16 %v185
    %v433 = vunpack.c.h.b16 %v185
    %v434 = vunpack.c.l.b16 %v186
    %v435 = vunpack.c.h.b16 %v186
    %v436 = vunpack.c.l.b16 %v187
    %v437 = vunpack.c.h.b16 %v187
    %v438 = vunpack.c.l.b16 %v188
    %v439 = vunpack.c.h.b16 %v188
    %v440 = vunpack.c.l.b16 %v189
    %v441 = vunpack.c.h.b16 %v189
    %v442 = vunpack.c.l.b16 %v190
    %v443 = vunpack.c.h.b16 %v190
    %v444 = vunpack.c.l.b16 %v191
    %v445 = vunpack.c.h.b16 %v191
    %v446 = vunpack.c.l.b16 %v192
    %v447 = vunpack.c.h.b16 %v192
    %v448 = vunpack.c.l.b16 %v193
    %v449 = vunpack.c.h.b16 %v193
    %v450 = vunpack.c.l.b16 %v194
    %v451 = vunpack.c.h.b16 %v194
    %v452 = vunpack.c.l.b16 %v195
    %v453 = vunpack.c.h.b16 %v195
    %v454 = vunpack.c.l.b16 %v196
    %v455 = vunpack.c.h.b16 %v196
    %v456 = vunpack.c.l.b16 %v197
    %v457 = vunpack.c.h.b16 %v197
    %v458 = vunpack.c.l.b16 %v198
    %v459 = vunpack.c.h.b16 %v198
    %v460 = vunpack.c.l.b16 %v199
    %v461 = vunpack.c.h.b16 %v199
    %v462 = vunpack.c.l.b16 %v200
    %v463 = vunpack.c.h.b16 %v200
    %v464 = vunpack.c.l.b16 %v201
    %v465 = vunpack.c.h.b16 %v201
    %v466 = vunpack.c.l.b16 %v202
    %v467 = vunpack.c.h.b16 %v202
    %v468 = vunpack.c.l.b16 %v203
    %v469 = vunpack.c.h.b16 %v203
    %v470 = vunpack.c.l.b16 %v204
    %v471 = vunpack.c.h.b16 %v204
    %v472 = vunpack.c.l.b16 %v205
    %v473 = vunpack.c.h.b16 %v205
    %v474 = vunpack.c.l.b16 %v206
    %v475 = vunpack.c.h.b16 %v206
    %v476 = vunpack.c.l.b16 %v207
    %v477 = vunpack.c.h.b16 %v207
    %v478 = vunpack.c.l.b16 %v208
    %v479 = vunpack.c.h.b16 %v208
    %v480 = vunpack.c.l.b16 %v209
    %v481 = vunpack.c.h.b16 %v209
    %v482 = vunpack.c.l.b16 %v210
    %v483 = vunpack.c.h.b16 %v210
    %v484 = vunpack.c.l.b16 %v211
    %v485 = vunpack.c.h.b16 %v211
    %v486 = vunpack.c.l.b16 %v212
    %v487 = vunpack.c.h.b16 %v212
    %v488 = vunpack.c.l.b16 %v213
    %v489 = vunpack.c.h.b16 %v213
    %v490 = vpack.c.b16 %v378, %v362
    %v491 = vpack.c.b16 %v379, %v363
    %v492 = vpack.c.b16 %v380, %v364
    %v493 = vpack.c.b16 %v381, %v365
    %v494 = vpack.c.b16 %v382, %v366
    %v495 = vpack.c.b16 %v383, %v367
    %v496 = vpack.c.b16 %v384, %v368
    %v497 = vpack.c.b16 %v385, %v369
    %v498 = vpack.c.b16 %v386, %v370
    %v499 = vpack.c.b16 %v387, %v371
    %v500 = vpack.c.b16 %v388, %v372
    %v501 = vpack.c.b16 %v389, %v373
    %v502 = vpack.c.b16 %v390, %v374
    %v503 = vpack.c.b16 %v391, %v375
    %v504 = vpack.c.b16 %v392, %v376
    %v505 = vpack.c.b16 %v393, %v377
    %v506 = vpack.c.b16 %v410, %v394
    %v507 = vpack.c.b16 %v411, %v395
    %v508 = vpack.c.b16 %v412, %v396
    %v509 = vpack.c.b16 %v413, %v397
    %v510 = vpack.c.b16 %v414, %v398
    %v511 = vpack.c.b16 %v415, %v399
    %v512 = vpack.c.b16 %v416, %v400
    %v513 = vpack.c.b16 %v417, %v401
    %v514 = vpack.c.b16 %v418, %v402
    %v515 = vpack.c.b16 %v419, %v403
    %v516 = vpack.c.b16 %v420, %v404
    %v517 = vpack.c.b16 %v421, %v405
    %v518 = vpack.c.b16 %v422, %v406
    %v519 = vpack.c.b16 %v423, %v407
    %v520 = vpack.c.b16 %v424, %v408
    %v521 = vpack.c.b16 %v425, %v409
    %v522 = vpack.c.b16 %v442, %v426
    %v523 = vpack.c.b16 %v443, %v427
    %v524 = vpack.c.b16 %v444, %v428
    %v525 = vpack.c.b16 %v445, %v429
    %v526 = vpack.c.b16 %v446, %v430
    %v527 = vpack.c.b16 %v447, %v431
    %v528 = vpack.c.b16 %v448, %v432
    %v529 = vpack.c.b16 %v449, %v433
    %v530 = vpack.c.b16 %v450, %v434
    %v531 = vpack.c.b16 %v451, %v435
    %v532 = vpack.c.b16 %v452, %v436
    %v533 = vpack.c.b16 %v453, %v437
    %v534 = vpack.c.b16 %v454, %v438
    %v535 = vpack.c.b16 %v455, %v439
    %v536 = vpack.c.b16 %v456, %v440
    %v537 = vpack.c.b16 %v457, %v441
    %v538 = vpack.c.b16 %v474, %v458
    %v539 = vpack.c.b16 %v475, %v459
    %v540 = vpack.c.b16 %v476, %v460
    %v541 = vpack.c.b16 %v477, %v461
    %v542 = vpack.c.b16 %v478, %v462
    %v543 = vpack.c.b16 %v479, %v463
    %v544 = vpack.c.b16 %v480, %v464
    %v545 = vpack.c.b16 %v481, %v465
    %v546 = vpack.c.b16 %v482, %v466
    %v547 = vpack.c.b16 %v483, %v467
    %v548 = vpack.c.b16 %v484, %v468
    %v549 = vpack.c.b16 %v485, %v469
    %v550 = vpack.c.b16 %v486, %v470
    %v551 = vpack.c.b16 %v487, %v471
    %v552 = vpack.c.b16 %v488, %v472
    %v553 = vpack.c.b16 %v489, %v473
    %vm618 = vcmask 523264
    %v620 = vsel %vm618, %v149, 0
    %622 = vmatprep.subr.bf16.mxu0 %v491
    %623 = vmatpush1.bf16.msra.mxu0 %v490
    %624 = vmatprep.subr.bf16.mxu0 %v507
    %625 = vmatpush1.bf16.msra.mxu0 %v506
    %626 = vmatprep.subr.bf16.mxu0 %v523
    %627 = vmatpush1.bf16.msra.mxu0 %v522
    %628 = vmatprep.subr.bf16.mxu0 %v539
    %629 = vmatpush1.bf16.msra.mxu0 %v538
    %630 = vmatprep.subr.bf16.mxu0 0
    %631 = vmatpush1.bf16.msra.mxu0 0
    %632 = vmatprep.subr.bf16.mxu0 0
    %633 = vmatpush1.bf16.msra.mxu0 0
    %634 = vmatprep.subr.bf16.mxu0 0
    %635 = vmatpush1.bf16.msra.mxu0 0
    %636 = vmatprep.subr.bf16.mxu0 0
    %637 = vmatpush1.bf16.msra.mxu0 0
    %638 = vmatprep.subr.bf16.mxu0 0
    %639 = vmatpush1.bf16.msra.mxu0 0
    %640 = vmatprep.subr.bf16.mxu0 0
    %641 = vmatpush1.bf16.msra.mxu0 0
    %642 = vmatprep.subr.bf16.mxu0 0
    %643 = vmatpush1.bf16.msra.mxu0 0
    %644 = vmatprep.subr.bf16.mxu0 0
    %645 = vmatpush1.bf16.msra.mxu0 0
    %646 = vmatprep.subr.bf16.mxu0 0
    %647 = vmatpush1.bf16.msra.mxu0 0
    %648 = vmatprep.subr.bf16.mxu0 0
    %649 = vmatpush1.bf16.msra.mxu0 0
    %650 = vmatprep.subr.bf16.mxu0 0
    %651 = vmatpush1.bf16.msra.mxu0 0
    %652 = vmatprep.subr.bf16.mxu0 0
    %653 = vmatpush1.bf16.msra.mxu0 0
    %654 = vmatprep.mubr.bf16.mxu0 0
    %655 = vmatmul.mubr.bf16.gmra.mrb[0].mxu0 %v620
    %v656 = vpop.f32.mrb[0].mxu0
    %v657 = vadd.f32 %v221, %v656
    %v658 = vpop.f32.mrb[0].mxu0
    %v659 = vadd.f32 %v225, %v658
    %v660 = vpop.f32.mrb[0].mxu0
    %v661 = vpop.f32.mrb[0].mxu0
    %662 = vdwg.mxu0
    %663 = vmatprep.subr.bf16.mxu0 %v493
    %664 = vmatpush1.bf16.msra.mxu0 %v492
    %665 = vmatprep.subr.bf16.mxu0 %v509
    %666 = vmatpush1.bf16.msra.mxu0 %v508
    %667 = vmatprep.subr.bf16.mxu0 %v525
    %668 = vmatpush1.bf16.msra.mxu0 %v524
    %669 = vmatprep.subr.bf16.mxu0 %v541
    %670 = vmatpush1.bf16.msra.mxu0 %v540
    %671 = vmatprep.subr.bf16.mxu0 0
    %672 = vmatpush1.bf16.msra.mxu0 0
    %673 = vmatprep.subr.bf16.mxu0 0
    %674 = vmatpush1.bf16.msra.mxu0 0
    %675 = vmatprep.subr.bf16.mxu0 0
    %676 = vmatpush1.bf16.msra.mxu0 0
    %677 = vmatprep.subr.bf16.mxu0 0
    %678 = vmatpush1.bf16.msra.mxu0 0
    %679 = vmatprep.subr.bf16.mxu0 0
    %680 = vmatpush1.bf16.msra.mxu0 0
    %681 = vmatprep.subr.bf16.mxu0 0
    %682 = vmatpush1.bf16.msra.mxu0 0
    %683 = vmatprep.subr.bf16.mxu0 0
    %684 = vmatpush1.bf16.msra.mxu0 0
    %685 = vmatprep.subr.bf16.mxu0 0
    %686 = vmatpush1.bf16.msra.mxu0 0
    %687 = vmatprep.subr.bf16.mxu0 0
    %688 = vmatpush1.bf16.msra.mxu0 0
    %689 = vmatprep.subr.bf16.mxu0 0
    %690 = vmatpush1.bf16.msra.mxu0 0
    %691 = vmatprep.subr.bf16.mxu0 0
    %692 = vmatpush1.bf16.msra.mxu0 0
    %693 = vmatprep.subr.bf16.mxu0 0
    %694 = vmatpush1.bf16.msra.mxu0 0
    %695 = vmatprep.mubr.bf16.mxu0 0
    %696 = vmatmul.mubr.bf16.gmra.mrb[0].mxu0 %v620
    %v697 = vpop.f32.mrb[0].mxu0
    %v698 = vadd.f32 %v229, %v697
    %v699 = vpop.f32.mrb[0].mxu0
    %v700 = vadd.f32 %v233, %v699
    %v701 = vpop.f32.mrb[0].mxu0
    %v702 = vpop.f32.mrb[0].mxu0
    %703 = vdwg.mxu0
    %704 = vmatprep.subr.bf16.mxu0 %v495
    %705 = vmatpush1.bf16.msra.mxu0 %v494
    %706 = vmatprep.subr.bf16.mxu0 %v511
    %707 = vmatpush1.bf16.msra.mxu0 %v510
    %708 = vmatprep.subr.bf16.mxu0 %v527
    %709 = vmatpush1.bf16.msra.mxu0 %v526
    %710 = vmatprep.subr.bf16.mxu0 %v543
    %711 = vmatpush1.bf16.msra.mxu0 %v542
    %712 = vmatprep.subr.bf16.mxu0 0
    %713 = vmatpush1.bf16.msra.mxu0 0
    %714 = vmatprep.subr.bf16.mxu0 0
    %715 = vmatpush1.bf16.msra.mxu0 0
    %716 = vmatprep.subr.bf16.mxu0 0
    %717 = vmatpush1.bf16.msra.mxu0 0
    %718 = vmatprep.subr.bf16.mxu0 0
    %719 = vmatpush1.bf16.msra.mxu0 0
    %720 = vmatprep.subr.bf16.mxu0 0
    %721 = vmatpush1.bf16.msra.mxu0 0
    %722 = vmatprep.subr.bf16.mxu0 0
    %723 = vmatpush1.bf16.msra.mxu0 0
    %724 = vmatprep.subr.bf16.mxu0 0
    %725 = vmatpush1.bf16.msra.mxu0 0
    %726 = vmatprep.subr.bf16.mxu0 0
    %727 = vmatpush1.bf16.msra.mxu0 0
    %728 = vmatprep.subr.bf16.mxu0 0
    %729 = vmatpush1.bf16.msra.mxu0 0
    %730 = vmatprep.subr.bf16.mxu0 0
    %731 = vmatpush1.bf16.msra.mxu0 0
    %732 = vmatprep.subr.bf16.mxu0 0
    %733 = vmatpush1.bf16.msra.mxu0 0
    %734 = vmatprep.subr.bf16.mxu0 0
    %735 = vmatpush1.bf16.msra.mxu0 0
    %736 = vmatprep.mubr.bf16.mxu0 0
    %737 = vmatmul.mubr.bf16.gmra.mrb[0].mxu0 %v620
    %v738 = vpop.f32.mrb[0].mxu0
    %v739 = vadd.f32 %v237, %v738
    %v740 = vpop.f32.mrb[0].mxu0
    %v741 = vadd.f32 %v241, %v740
    %v742 = vpop.f32.mrb[0].mxu0
    %v743 = vpop.f32.mrb[0].mxu0
    %744 = vdwg.mxu0
    %745 = vmatprep.subr.bf16.mxu0 %v497
    %746 = vmatpush1.bf16.msra.mxu0 %v496
    %747 = vmatprep.subr.bf16.mxu0 %v513
    %748 = vmatpush1.bf16.msra.mxu0 %v512
    %749 = vmatprep.subr.bf16.mxu0 %v529
    %750 = vmatpush1.bf16.msra.mxu0 %v528
    %751 = vmatprep.subr.bf16.mxu0 %v545
    %752 = vmatpush1.bf16.msra.mxu0 %v544
    %753 = vmatprep.subr.bf16.mxu0 0
    %754 = vmatpush1.bf16.msra.mxu0 0
    %755 = vmatprep.subr.bf16.mxu0 0
    %756 = vmatpush1.bf16.msra.mxu0 0
    %757 = vmatprep.subr.bf16.mxu0 0
    %758 = vmatpush1.bf16.msra.mxu0 0
    %759 = vmatprep.subr.bf16.mxu0 0
    %760 = vmatpush1.bf16.msra.mxu0 0
    %761 = vmatprep.subr.bf16.mxu0 0
    %762 = vmatpush1.bf16.msra.mxu0 0
    %763 = vmatprep.subr.bf16.mxu0 0
    %764 = vmatpush1.bf16.msra.mxu0 0
    %765 = vmatprep.subr.bf16.mxu0 0
    %766 = vmatpush1.bf16.msra.mxu0 0
    %767 = vmatprep.subr.bf16.mxu0 0
    %768 = vmatpush1.bf16.msra.mxu0 0
    %769 = vmatprep.subr.bf16.mxu0 0
    %770 = vmatpush1.bf16.msra.mxu0 0
    %771 = vmatprep.subr.bf16.mxu0 0
    %772 = vmatpush1.bf16.msra.mxu0 0
    %773 = vmatprep.subr.bf16.mxu0 0
    %774 = vmatpush1.bf16.msra.mxu0 0
    %775 = vmatprep.subr.bf16.mxu0 0
    %776 = vmatpush1.bf16.msra.mxu0 0
    %777 = vmatprep.mubr.bf16.mxu0 0
    %778 = vmatmul.mubr.bf16.gmra.mrb[0].mxu0 %v620
    %v779 = vpop.f32.mrb[0].mxu0
    %v780 = vadd.f32 %v245, %v779
    %v781 = vpop.f32.mrb[0].mxu0
    %v782 = vadd.f32 %v249, %v781
    %v783 = vpop.f32.mrb[0].mxu0
    %v784 = vpop.f32.mrb[0].mxu0
    %785 = vdwg.mxu0
    %786 = vmatprep.subr.bf16.mxu0 %v499
    %787 = vmatpush1.bf16.msra.mxu0 %v498
    %788 = vmatprep.subr.bf16.mxu0 %v515
    %789 = vmatpush1.bf16.msra.mxu0 %v514
    %790 = vmatprep.subr.bf16.mxu0 %v531
    %791 = vmatpush1.bf16.msra.mxu0 %v530
    %792 = vmatprep.subr.bf16.mxu0 %v547
    %793 = vmatpush1.bf16.msra.mxu0 %v546
    %794 = vmatprep.subr.bf16.mxu0 0
    %795 = vmatpush1.bf16.msra.mxu0 0
    %796 = vmatprep.subr.bf16.mxu0 0
    %797 = vmatpush1.bf16.msra.mxu0 0
    %798 = vmatprep.subr.bf16.mxu0 0
    %799 = vmatpush1.bf16.msra.mxu0 0
    %800 = vmatprep.subr.bf16.mxu0 0
    %801 = vmatpush1.bf16.msra.mxu0 0
    %802 = vmatprep.subr.bf16.mxu0 0
    %803 = vmatpush1.bf16.msra.mxu0 0
    %804 = vmatprep.subr.bf16.mxu0 0
    %805 = vmatpush1.bf16.msra.mxu0 0
    %806 = vmatprep.subr.bf16.mxu0 0
    %807 = vmatpush1.bf16.msra.mxu0 0
    %808 = vmatprep.subr.bf16.mxu0 0
    %809 = vmatpush1.bf16.msra.mxu0 0
    %810 = vmatprep.subr.bf16.mxu0 0
    %811 = vmatpush1.bf16.msra.mxu0 0
    %812 = vmatprep.subr.bf16.mxu0 0
    %813 = vmatpush1.bf16.msra.mxu0 0
    %814 = vmatprep.subr.bf16.mxu0 0
    %815 = vmatpush1.bf16.msra.mxu0 0
    %816 = vmatprep.subr.bf16.mxu0 0
    %817 = vmatpush1.bf16.msra.mxu0 0
    %818 = vmatprep.mubr.bf16.mxu0 0
    %819 = vmatmul.mubr.bf16.gmra.mrb[0].mxu0 %v620
    %v820 = vpop.f32.mrb[0].mxu0
    %v821 = vadd.f32 %v253, %v820
    %v822 = vpop.f32.mrb[0].mxu0
    %v823 = vadd.f32 %v257, %v822
    %v824 = vpop.f32.mrb[0].mxu0
    %v825 = vpop.f32.mrb[0].mxu0
    %826 = vdwg.mxu0
    %827 = vmatprep.subr.bf16.mxu0 %v501
    %828 = vmatpush1.bf16.msra.mxu0 %v500
    %829 = vmatprep.subr.bf16.mxu0 %v517
    %830 = vmatpush1.bf16.msra.mxu0 %v516
    %831 = vmatprep.subr.bf16.mxu0 %v533
    %832 = vmatpush1.bf16.msra.mxu0 %v532
    %833 = vmatprep.subr.bf16.mxu0 %v549
    %834 = vmatpush1.bf16.msra.mxu0 %v548
    %835 = vmatprep.subr.bf16.mxu0 0
    %836 = vmatpush1.bf16.msra.mxu0 0
    %837 = vmatprep.subr.bf16.mxu0 0
    %838 = vmatpush1.bf16.msra.mxu0 0
    %839 = vmatprep.subr.bf16.mxu0 0
    %840 = vmatpush1.bf16.msra.mxu0 0
    %841 = vmatprep.subr.bf16.mxu0 0
    %842 = vmatpush1.bf16.msra.mxu0 0
    %843 = vmatprep.subr.bf16.mxu0 0
    %844 = vmatpush1.bf16.msra.mxu0 0
    %845 = vmatprep.subr.bf16.mxu0 0
    %846 = vmatpush1.bf16.msra.mxu0 0
    %847 = vmatprep.subr.bf16.mxu0 0
    %848 = vmatpush1.bf16.msra.mxu0 0
    %849 = vmatprep.subr.bf16.mxu0 0
    %850 = vmatpush1.bf16.msra.mxu0 0
    %851 = vmatprep.subr.bf16.mxu0 0
    %852 = vmatpush1.bf16.msra.mxu0 0
    %853 = vmatprep.subr.bf16.mxu0 0
    %854 = vmatpush1.bf16.msra.mxu0 0
    %855 = vmatprep.subr.bf16.mxu0 0
    %856 = vmatpush1.bf16.msra.mxu0 0
    %857 = vmatprep.subr.bf16.mxu0 0
    %858 = vmatpush1.bf16.msra.mxu0 0
    %859 = vmatprep.mubr.bf16.mxu0 0
    %860 = vmatmul.mubr.bf16.gmra.mrb[0].mxu0 %v620
    %v861 = vpop.f32.mrb[0].mxu0
    %v862 = vadd.f32 %v261, %v861
    %v863 = vpop.f32.mrb[0].mxu0
    %v864 = vadd.f32 %v265, %v863
    %v865 = vpop.f32.mrb[0].mxu0
    %v866 = vpop.f32.mrb[0].mxu0
    %867 = vdwg.mxu0
    %868 = vmatprep.subr.bf16.mxu0 %v503
    %869 = vmatpush1.bf16.msra.mxu0 %v502
    %870 = vmatprep.subr.bf16.mxu0 %v519
    %871 = vmatpush1.bf16.msra.mxu0 %v518
    %872 = vmatprep.subr.bf16.mxu0 %v535
    %873 = vmatpush1.bf16.msra.mxu0 %v534
    %874 = vmatprep.subr.bf16.mxu0 %v551
    %875 = vmatpush1.bf16.msra.mxu0 %v550
    %876 = vmatprep.subr.bf16.mxu0 0
    %877 = vmatpush1.bf16.msra.mxu0 0
    %878 = vmatprep.subr.bf16.mxu0 0
    %879 = vmatpush1.bf16.msra.mxu0 0
    %880 = vmatprep.subr.bf16.mxu0 0
    %881 = vmatpush1.bf16.msra.mxu0 0
    %882 = vmatprep.subr.bf16.mxu0 0
    %883 = vmatpush1.bf16.msra.mxu0 0
    %884 = vmatprep.subr.bf16.mxu0 0
    %885 = vmatpush1.bf16.msra.mxu0 0
    %886 = vmatprep.subr.bf16.mxu0 0
    %887 = vmatpush1.bf16.msra.mxu0 0
    %888 = vmatprep.subr.bf16.mxu0 0
    %889 = vmatpush1.bf16.msra.mxu0 0
    %890 = vmatprep.subr.bf16.mxu0 0
    %891 = vmatpush1.bf16.msra.mxu0 0
    %892 = vmatprep.subr.bf16.mxu0 0
    %893 = vmatpush1.bf16.msra.mxu0 0
    %894 = vmatprep.subr.bf16.mxu0 0
    %895 = vmatpush1.bf16.msra.mxu0 0
    %896 = vmatprep.subr.bf16.mxu0 0
    %897 = vmatpush1.bf16.msra.mxu0 0
    %898 = vmatprep.subr.bf16.mxu0 0
    %899 = vmatpush1.bf16.msra.mxu0 0
    %900 = vmatprep.mubr.bf16.mxu0 0
    %901 = vmatmul.mubr.bf16.gmra.mrb[0].mxu0 %v620
    %v902 = vpop.f32.mrb[0].mxu0
    %v903 = vadd.f32 %v269, %v902
    %v904 = vpop.f32.mrb[0].mxu0
    %v905 = vadd.f32 %v273, %v904
    %v906 = vpop.f32.mrb[0].mxu0
    %v907 = vpop.f32.mrb[0].mxu0
    %908 = vdwg.mxu0
    %909 = vmatprep.subr.bf16.mxu0 %v505
    %910 = vmatpush1.bf16.msra.mxu0 %v504
    %911 = vmatprep.subr.bf16.mxu0 %v521
    %912 = vmatpush1.bf16.msra.mxu0 %v520
    %913 = vmatprep.subr.bf16.mxu0 %v537
    %914 = vmatpush1.bf16.msra.mxu0 %v536
    %915 = vmatprep.subr.bf16.mxu0 %v553
    %916 = vmatpush1.bf16.msra.mxu0 %v552
    %917 = vmatprep.subr.bf16.mxu0 0
    %918 = vmatpush1.bf16.msra.mxu0 0
    %919 = vmatprep.subr.bf16.mxu0 0
    %920 = vmatpush1.bf16.msra.mxu0 0
    %921 = vmatprep.subr.bf16.mxu0 0
    %922 = vmatpush1.bf16.msra.mxu0 0
    %923 = vmatprep.subr.bf16.mxu0 0
    %924 = vmatpush1.bf16.msra.mxu0 0
    %925 = vmatprep.subr.bf16.mxu0 0
    %926 = vmatpush1.bf16.msra.mxu0 0
    %927 = vmatprep.subr.bf16.mxu0 0
    %928 = vmatpush1.bf16.msra.mxu0 0
    %929 = vmatprep.subr.bf16.mxu0 0
    %930 = vmatpush1.bf16.msra.mxu0 0
    %931 = vmatprep.subr.bf16.mxu0 0
    %932 = vmatpush1.bf16.msra.mxu0 0
    %933 = vmatprep.subr.bf16.mxu0 0
    %934 = vmatpush1.bf16.msra.mxu0 0
    %935 = vmatprep.subr.bf16.mxu0 0
    %936 = vmatpush1.bf16.msra.mxu0 0
    %937 = vmatprep.subr.bf16.mxu0 0
    %938 = vmatpush1.bf16.msra.mxu0 0
    %939 = vmatprep.subr.bf16.mxu0 0
    %940 = vmatpush1.bf16.msra.mxu0 0
    %941 = vmatprep.mubr.bf16.mxu0 0
    %942 = vmatmul.mubr.bf16.gmra.mrb[0].mxu0 %v620
    %v943 = vpop.f32.mrb[0].mxu0
    %v944 = vadd.f32 %v277, %v943
    %v945 = vpop.f32.mrb[0].mxu0
    %v946 = vadd.f32 %v281, %v945
    %v947 = vpop.f32.mrb[0].mxu0
    %v948 = vpop.f32.mrb[0].mxu0
    %949 = vdwg.mxu0
    %v950 = vmax.f32 %v657, 0.0
    %v951 = vmax.f32 %v659, 0.0
    %v952 = vmax.f32 %v698, 0.0
    %v953 = vmax.f32 %v700, 0.0
    %v954 = vmax.f32 %v739, 0.0
    %v955 = vmax.f32 %v741, 0.0
    %v956 = vmax.f32 %v780, 0.0
    %v957 = vmax.f32 %v782, 0.0
    %v958 = vmax.f32 %v821, 0.0
    %v959 = vmax.f32 %v823, 0.0
    %v960 = vmax.f32 %v862, 0.0
    %v961 = vmax.f32 %v864, 0.0
    %v962 = vmax.f32 %v903, 0.0
    %v963 = vmax.f32 %v905, 0.0
    %v964 = vmax.f32 %v944, 0.0
    %v965 = vmax.f32 %v946, 0.0
    %v982 = vcombine.low %v950, %v951
    %v983 = vcombine.low %v952, %v953
    %v985 = vunpack.c.l.s4 1983009808
    %v986 = vunpack.c.0.s8 %v985
    %v987 = vlaneseq
    %v988 = vshrl.u32 %v987, 7
    %v989 = vsub.s32 %v986, %v988
    %v990 = vrot.slane %v982, %v989
    %v992 = vunpack.c.l.s4 1983009808
    %v993 = vunpack.c.0.s8 %v992
    %v994 = vlaneseq
    %v995 = vshrl.u32 %v994, 7
    %v996 = vsub.s32 %v993, %v995
    %v997 = vrot.slane %v983, %v996
    %v998 = vcombine.low %v990, %v997
    %v999 = vcombine.low %v954, %v955
    %v1000 = vcombine.low %v956, %v957
    %v1002 = vunpack.c.l.s4 1983009808
    %v1003 = vunpack.c.0.s8 %v1002
    %v1004 = vlaneseq
    %v1005 = vshrl.u32 %v1004, 7
    %v1006 = vsub.s32 %v1003, %v1005
    %v1007 = vrot.slane %v999, %v1006
    %v1009 = vunpack.c.l.s4 1983009808
    %v1010 = vunpack.c.0.s8 %v1009
    %v1011 = vlaneseq
    %v1012 = vshrl.u32 %v1011, 7
    %v1013 = vsub.s32 %v1010, %v1012
    %v1014 = vrot.slane %v1000, %v1013
    %v1015 = vcombine.low %v1007, %v1014
    %v1016 = vcombine.low %v958, %v959
    %v1017 = vcombine.low %v960, %v961
    %v1019 = vunpack.c.l.s4 1983009808
    %v1020 = vunpack.c.0.s8 %v1019
    %v1021 = vlaneseq
    %v1022 = vshrl.u32 %v1021, 7
    %v1023 = vsub.s32 %v1020, %v1022
    %v1024 = vrot.slane %v1016, %v1023
    %v1026 = vunpack.c.l.s4 1983009808
    %v1027 = vunpack.c.0.s8 %v1026
    %v1028 = vlaneseq
    %v1029 = vshrl.u32 %v1028, 7
    %v1030 = vsub.s32 %v1027, %v1029
    %v1031 = vrot.slane %v1017, %v1030
    %v1032 = vcombine.low %v1024, %v1031
    %v1033 = vcombine.low %v962, %v963
    %v1034 = vcombine.low %v964, %v965
    %v1036 = vunpack.c.l.s4 1983009808
    %v1037 = vunpack.c.0.s8 %v1036
    %v1038 = vlaneseq
    %v1039 = vshrl.u32 %v1038, 7
    %v1040 = vsub.s32 %v1037, %v1039
    %v1041 = vrot.slane %v1033, %v1040
    %v1043 = vunpack.c.l.s4 1983009808
    %v1044 = vunpack.c.0.s8 %v1043
    %v1045 = vlaneseq
    %v1046 = vshrl.u32 %v1045, 7
    %v1047 = vsub.s32 %v1044, %v1046
    %v1048 = vrot.slane %v1034, %v1047
    %v1049 = vcombine.low %v1041, %v1048
    %1054 = vst [vmem:[%s5] sm:$0xff] %v998
    %1055 = vst [vmem:[%s5 + $0x8] sm:$0xff] %v1015
    %1056 = vst [vmem:[%s5 + $0x10] sm:$0xff] %v1032
    %1057 = vst [vmem:[%s5 + $0x18] sm:$0xff] %v1049
    // Predicated region
    $region26: #{attentional_weights_forward.1} parent=1 // pred_check
      _
    $region27: #{attentional_weights_forward.1} parent=1 // pred_check_branch
      %1059 = sbr.rel (0) target = $region29
    $region28: #{attentional_weights_forward.1} parent=1 // pred_region
      _
    $region29: #{attentional_weights_forward.1} parent=1 // pred_fallthru
      _
    // Predicated region
    $region30: #{attentional_weights_forward.1} parent=1 // pred_check
      _
    $region31: #{attentional_weights_forward.1} parent=1 // pred_check_branch
      %1061 = sbr.rel (0) target = $region33
    $region32: #{attentional_weights_forward.1} parent=1 // pred_region
      _
    $region33: #{attentional_weights_forward.1} parent=1 // pred_fallthru
      _
    %1062 = vsyncpa [#allocation3], 1

</llo_original>
